<compile_context>
chip_gen: v7x
topology: tpu7x:2x2x1
jax: 0.10.0
libtpu: 0.0.40
codegen_flags: <defaults>
</compile_context>

<pallas_src>
import math
from functools import partial

import jax
import jax.numpy as jnp
from jax.experimental import pallas as pl
from jax.experimental.pallas import tpu as pltpu


def _round_up(n, m):
    return (n + m - 1) // m * m


def _erf(x):
    # erf via the Numerical-Recipes erfc rational approximation (|err| < 1.2e-7).
    # Only needs exp / mul / add / where, all guaranteed to lower in Mosaic.
    z = jnp.abs(x)
    t = 1.0 / (1.0 + 0.5 * z)
    poly = t * jnp.exp(
        -z * z - 1.26551223
        + t * (1.00002368
        + t * (0.37409196
        + t * (0.09678418
        + t * (-0.18628806
        + t * (0.27886807
        + t * (-1.13520398
        + t * (1.48851587
        + t * (-0.82215223
        + t * 0.17087277)))))))))
    erfc = jnp.where(x >= 0, poly, 2.0 - poly)
    return 1.0 - erfc


def _gelu_exact(x):
    # PyTorch nn.GELU() default is the exact (erf) formulation.
    return 0.5 * x * (1.0 + _erf(x * (1.0 / math.sqrt(2.0))))


def _gated_kernel(x_ref, w_ref, bias_ref, w2_ref, b2_ref, out_ref, *,
                  bb, seq, cout, cpad, mid, skip_is_identity):
    # x block: (bb, S, Cin) in the input dtype.  scale/shift are folded into
    # the weights on the host, so raw x feeds the MXU directly.
    x3 = x_ref[...]
    cin = x3.shape[-1]

    # --- one fused MXU matmul: x @ [gate_a | gate_b | (skip) | se1] --------
    x2 = x3.reshape(bb * seq, cin)
    y = jnp.dot(x2, w_ref[...], preferred_element_type=jnp.float32)
    y = y + bias_ref[...]                                  # (bb*S, Ntot) f32
    y3 = y.reshape(bb, seq, y.shape[-1])                   # (bb, S, Ntot)

    # Every segment starts on a 128-lane boundary -> pure masked selects,
    # no cross-lane relayout.
    a = y3[..., :cpad]
    b = y3[..., cpad:2 * cpad]
    gate = a * jax.nn.sigmoid(b)                           # (bb, S, cpad)

    # --- SE branch: first layer already in the matmul; mean is exact -------
    se_off = (2 if skip_is_identity else 3) * cpad
    h = jnp.mean(y3[..., se_off:se_off + mid], axis=1)     # (bb, mid)
    h = _gelu_exact(h)
    s = jnp.sum(h[:, :, None] * w2_ref[...][None, :, :], axis=1) + b2_ref[...]
    se = jax.nn.sigmoid(s)                                 # (bb, cpad)

    gse = gate * se[:, None, :]                            # (bb, S, cpad)

    # --- skip + gate * se ---------------------------------------------------
    if skip_is_identity:
        out = x3.astype(jnp.float32) + gse[..., :cout]     # Cin == Cout
    else:
        out = (y3[..., 2 * cpad:3 * cpad] + gse)[..., :cout]
    out_ref[...] = out.astype(out_ref.dtype)


def _vmem_budget():
    """(vmem_limit_bytes, per-step block budget) derived per TPU generation."""
    try:
        cap = int(pltpu.get_tpu_info().vmem_capacity_bytes)
    except Exception:
        cap = 64 << 20  # conservative: v7x per-TensorCore capacity
    vmem_limit = min(max(cap - (16 << 20), 32 << 20), 96 << 20)
    block_budget = min(vmem_limit // 2, 28 << 20)
    return vmem_limit, block_budget


def _pick_batch_block(batch, seq, per_row_bytes, block_budget, target_rows=1024):
    """Largest divisor Bb of batch s.t. the working set fits and rows>=target."""
    if seq % 8 != 0:
        # keep the in-kernel (Bb,S,C)->(Bb*S,C) merge layout-preserving
        return 1
    if seq * per_row_bytes > block_budget:
        raise ValueError(
            f"Gated Pallas kernel: a single-batch row block ({seq} rows x "
            f"{per_row_bytes} B/row) exceeds the VMEM block budget "
            f"({block_budget} B).  An S-tiled variant is not implemented.")
    divisors = [d for d in range(1, batch + 1) if batch % d == 0]
    best = 1
    for d in divisors:
        if d * seq * per_row_bytes > block_budget:
            break
        best = d
        if d * seq >= target_rows:
            break
    # Keep >=2 grid steps when possible: enables DMA/compute overlap and lets
    # ("parallel",) shard the grid across v7x's two TensorCores.
    if batch >= 2:
        while best > 1 and batch // best < 2:
            smaller = [d for d in divisors if d < best]
            best = smaller[-1] if smaller else 1
    return best


def gated_forward(x, params, *, in_channels, out_channels):
    """Pallas forward for Gated.  x: (B, S, Cin) channels-last."""
    B, S, Cin = x.shape
    assert Cin == in_channels
    Cout = out_channels
    mid = params["w1"].shape[1]
    skip_identity = "ws" not in params
    if skip_identity:
        assert in_channels == out_channels
    Cpad = _round_up(Cout, 128)

    f32 = lambda v: v.astype(jnp.float32)
    scale, shift = f32(params["scale"]), f32(params["shift"])
    wg, bg = f32(params["wg"]), f32(params["bg"])
    w1, b1 = f32(params["w1"]), f32(params["b1"])
    w2, b2 = f32(params["w2"]), f32(params["b2"])

    # Fold the affine (x*scale + shift) into gate / SE weights (exact in f32).
    wg_f = scale[:, None] * wg                    # (Cin, 2*Cout)
    bg_f = bg + shift @ wg                        # (2*Cout,)
    w1_f = scale[:, None] * w1                    # (Cin, mid)
    b1_f = b1 + shift @ w1                        # (mid,)

    def pad_cols(w, bvec, width):
        pc = width - w.shape[1]
        return (jnp.pad(w, ((0, 0), (0, pc))), jnp.pad(bvec, ((0, pc),)))

    # Fused, lane-aligned projection:  [gate_a | gate_b | (skip) | se1]
    wa, ba = pad_cols(wg_f[:, :Cout], bg_f[:Cout], Cpad)
    wb, bb_ = pad_cols(wg_f[:, Cout:], bg_f[Cout:], Cpad)
    segs_w, segs_b = [wa, wb], [ba, bb_]
    if not skip_identity:
        ws_p, bs_p = pad_cols(f32(params["ws"]), f32(params["bs"]), Cpad)
        segs_w.append(ws_p)
        segs_b.append(bs_p)
    segs_w.append(w1_f)      # se1 segment starts on a 128-lane boundary
    segs_b.append(b1_f)
    W = jnp.concatenate(segs_w, axis=1)
    bias = jnp.concatenate(segs_b)
    Ntot = W.shape[1]

    w2_p, b2_p = pad_cols(w2, b2, Cpad)           # SE output in padded lanes

    # Feed the MXU in the input dtype (bf16 stays bf16); accumulate in f32.
    W = W.astype(x.dtype)
    row = lambda v: v.reshape(1, -1)

    itemsize = jnp.dtype(x.dtype).itemsize
    # Per-row working set: 2x double-buffered x/out blocks + f32 intermediates
    # (y at Ntot cols dominates, plus gate and gate*se at Cpad cols each).
    per_row = 2 * Cin * itemsize + 2 * Cout * itemsize + (Ntot + 2 * Cpad) * 4
    vmem_limit, block_budget = _vmem_budget()
    Bb = _pick_batch_block(B, S, per_row, block_budget)
    grid = (B // Bb,)

    kernel = partial(_gated_kernel, bb=Bb, seq=S, cout=Cout, cpad=Cpad,
                     mid=mid, skip_is_identity=skip_identity)

    flops = (2 * B * S * Cin * Ntot + 2 * B * mid * Cpad + 8 * B * S * Cpad)
    transcendentals = B * S * Cpad + B * (mid + Cpad)
    bytes_accessed = (x.size * itemsize + B * S * Cout * itemsize
                      + W.size * itemsize
                      + (Ntot + mid * Cpad + Cpad) * 4)

    return pl.pallas_call(
        kernel,
        out_shape=jax.ShapeDtypeStruct((B, S, Cout), x.dtype),
        grid=grid,
        in_specs=[
            pl.BlockSpec((Bb, S, Cin), lambda i: (i, 0, 0)),
            pl.BlockSpec((Cin, Ntot), lambda i: (0, 0)),
            pl.BlockSpec((1, Ntot), lambda i: (0, 0)),
            pl.BlockSpec((mid, Cpad), lambda i: (0, 0)),
            pl.BlockSpec((1, Cpad), lambda i: (0, 0)),
        ],
        out_specs=pl.BlockSpec((Bb, S, Cout), lambda i: (i, 0, 0)),
        compiler_params=pltpu.CompilerParams(
            dimension_semantics=("parallel",),
            vmem_limit_bytes=vmem_limit),
        cost_estimate=pl.CostEstimate(
            flops=flops, transcendentals=transcendentals,
            bytes_accessed=bytes_accessed),
    )(x, W, row(f32(bias)), w2_p, row(b2_p))


def gated_reference(x, params, *, out_channels):
    """Pure-JAX reference matching the PyTorch forward exactly."""
    xn = x * params["scale"] + params["shift"]
    xmean = jnp.mean(xn, axis=1, keepdims=True)
    g = xn @ params["wg"] + params["bg"]
    a, b = g[..., :out_channels], g[..., out_channels:]
    gate = a * jax.nn.sigmoid(b)
    h = jax.nn.gelu(xmean @ params["w1"] + params["b1"], approximate=False)
    se = jax.nn.sigmoid(h @ params["w2"] + params["b2"])
    skip = x @ params["ws"] + params["bs"] if "ws" in params else x
    return skip + gate * se


if __name__ == "__main__":
    # Module config: Gated(in_channels=32, out_channels=48, ratio=1/32)
    B, S = 2, 16
    Cin, Cout = 32, 48
    ratio = 1.0 / 32.0
    mid = math.ceil(Cin * ratio)  # = 1

    key = jax.random.PRNGKey(0)
    ks = jax.random.split(key, 16)
    rnd = lambda k, shape, s=0.1: s * jax.random.normal(k, shape, jnp.float32)

    # Linear weights stored (in, out) == W.T — mathematically identical layout.
    params = {
        "scale": 1.0 + rnd(ks[0], (Cin,)),
        "shift": rnd(ks[1], (Cin,)),
        "wg": rnd(ks[2], (Cin, 2 * Cout)),
        "bg": rnd(ks[3], (2 * Cout,)),
        "w1": rnd(ks[4], (Cin, mid)),
        "b1": rnd(ks[5], (mid,)),
        "w2": rnd(ks[6], (mid, Cout)),
        "b2": rnd(ks[7], (Cout,)),
        "ws": rnd(ks[8], (Cin, Cout)),   # skip Linear (Cin != Cout)
        "bs": rnd(ks[9], (Cout,)),
    }
    x = jax.random.normal(ks[10], (B, S, Cin), jnp.float32)

    out = gated_forward(x, params, in_channels=Cin, out_channels=Cout)
    out = jax.block_until_ready(out)
    ref = gated_reference(x, params, out_channels=Cout)
    assert out.shape == (B, S, Cout)
    assert jnp.allclose(out, ref, rtol=5e-5, atol=5e-5), (
        f"max abs err = {jnp.max(jnp.abs(out - ref))}")

    # Identity-skip path: Gated(in_channels=32) -> out_channels == in_channels.
    params_id = {k: v for k, v in params.items() if k not in ("ws", "bs")}
    params_id["wg"] = rnd(ks[11], (Cin, 2 * Cin))
    params_id["bg"] = rnd(ks[12], (2 * Cin,))
    params_id["w2"] = rnd(ks[13], (mid, Cin))
    params_id["b2"] = rnd(ks[14], (Cin,))
    out_id = gated_forward(x, params_id, in_channels=Cin, out_channels=Cin)
    out_id = jax.block_until_ready(out_id)
    ref_id = gated_reference(x, params_id, out_channels=Cin)
    assert out_id.shape == (B, S, Cin)
    assert jnp.allclose(out_id, ref_id, rtol=5e-5, atol=5e-5), (
        f"max abs err (identity skip) = {jnp.max(jnp.abs(out_id - ref_id))}")

    print("KERNEL_OK")
</pallas_src>

<mosaic_0001>
module attributes {stable_mosaic.version = 11 : i64} {
  func.func @_gated_kernel(%arg0: i32, %arg1: memref<1x16x32xf32, #tpu.memory_space<vmem>>, %arg2: memref<32x385xf32, #tpu.memory_space<vmem>>, %arg3: memref<1x385xf32, #tpu.memory_space<vmem>>, %arg4: memref<1x128xf32, #tpu.memory_space<vmem>>, %arg5: memref<1x128xf32, #tpu.memory_space<vmem>>, %arg6: memref<1x16x48xf32, #tpu.memory_space<vmem>>) attributes {dimension_semantics = [#tpu.dimension_semantics<parallel>], iteration_bounds = array<i64: 2>, scalar_prefetch = 0 : i64, scratch_operands = 0 : i64, tpu.core_type = #tpu.core_type<tc>, window_params = [{transform_indices = @transform_0, window_bounds = array<i64: 1, 16, 32>}, {pipeline_mode = #tpu.pipeline_mode<synchronous>, transform_indices = @transform_1, window_bounds = array<i64: 32, 385>}, {pipeline_mode = #tpu.pipeline_mode<synchronous>, transform_indices = @transform_2, window_bounds = array<i64: 1, 385>}, {pipeline_mode = #tpu.pipeline_mode<synchronous>, transform_indices = @transform_3, window_bounds = array<i64: 1, 128>}, {pipeline_mode = #tpu.pipeline_mode<synchronous>, transform_indices = @transform_4, window_bounds = array<i64: 1, 128>}, {transform_indices = @transform_5, window_bounds = array<i64: 1, 16, 48>}]} {
    %c0 = arith.constant 0 : index
    %c0_0 = arith.constant 0 : index
    %c0_1 = arith.constant 0 : index
    %0 = vector.load %arg1[%c0, %c0_0, %c0_1] : memref<1x16x32xf32, #tpu.memory_space<vmem>>, vector<1x16x32xf32>
    %1 = vector.shape_cast %0 : vector<1x16x32xf32> to vector<16x32xf32>
    %c0_2 = arith.constant 0 : index
    %c0_3 = arith.constant 0 : index
    %2 = vector.load %arg2[%c0_2, %c0_3] : memref<32x385xf32, #tpu.memory_space<vmem>>, vector<32x385xf32>
    %cst = arith.constant dense<0.000000e+00> : vector<16x385xf32>
    %3 = tpu.matmul %1, %2, %cst {dimension_numbers = #tpu.dot_dimension_numbers<[1], [0], [0], [1], [0, 0, 1, 1], [], []>} : vector<16x32xf32>, vector<32x385xf32>, vector<16x385xf32> -> vector<16x385xf32>
    %c0_4 = arith.constant 0 : index
    %c0_5 = arith.constant 0 : index
    %4 = vector.load %arg3[%c0_4, %c0_5] : memref<1x385xf32, #tpu.memory_space<vmem>>, vector<1x385xf32>
    %5 = vector.broadcast %4 : vector<1x385xf32> to vector<16x385xf32>
    %6 = arith.addf %3, %5 : vector<16x385xf32>
    %7 = vector.shape_cast %6 : vector<16x385xf32> to vector<1x16x385xf32>
    %8 = vector.extract_strided_slice %7 {offsets = [0, 0, 0], sizes = [1, 16, 128], strides = [1, 1, 1]} : vector<1x16x385xf32> to vector<1x16x128xf32>
    %9 = vector.extract_strided_slice %7 {offsets = [0, 0, 128], sizes = [1, 16, 128], strides = [1, 1, 1]} : vector<1x16x385xf32> to vector<1x16x128xf32>
    %10 = arith.negf %9 : vector<1x16x128xf32>
    %11 = math.exp %10 : vector<1x16x128xf32>
    %cst_6 = arith.constant 1.000000e+00 : f32
    %12 = vector.broadcast %cst_6 : f32 to vector<1x16x128xf32>
    %13 = arith.addf %12, %11 : vector<1x16x128xf32>
    %14 = arith.divf %12, %13 : vector<1x16x128xf32>
    %15 = arith.mulf %8, %14 : vector<1x16x128xf32>
    %16 = vector.extract_strided_slice %7 {offsets = [0, 0, 384], sizes = [1, 16, 1], strides = [1, 1, 1]} : vector<1x16x385xf32> to vector<1x16x1xf32>
    %cst_7 = arith.constant dense<0.000000e+00> : vector<1x1xf32>
    %17 = vector.multi_reduction <add>, %16, %cst_7 [1] : vector<1x16x1xf32> to vector<1x1xf32>
    %cst_8 = arith.constant 1.600000e+01 : f32
    %18 = vector.broadcast %cst_8 : f32 to vector<1x1xf32>
    %19 = arith.divf %17, %18 : vector<1x1xf32>
    %cst_9 = arith.constant 5.000000e-01 : f32
    %20 = vector.broadcast %cst_9 : f32 to vector<1x1xf32>
    %21 = arith.mulf %20, %19 : vector<1x1xf32>
    %cst_10 = arith.constant 0.707106769 : f32
    %22 = vector.broadcast %cst_10 : f32 to vector<1x1xf32>
    %23 = arith.mulf %19, %22 : vector<1x1xf32>
    %24 = math.absf %23 : vector<1x1xf32>
    %cst_11 = arith.constant 5.000000e-01 : f32
    %25 = vector.broadcast %cst_11 : f32 to vector<1x1xf32>
    %26 = arith.mulf %25, %24 : vector<1x1xf32>
    %cst_12 = arith.constant 1.000000e+00 : f32
    %27 = vector.broadcast %cst_12 : f32 to vector<1x1xf32>
    %28 = arith.addf %27, %26 : vector<1x1xf32>
    %cst_13 = arith.constant 1.000000e+00 : f32
    %29 = vector.broadcast %cst_13 : f32 to vector<1x1xf32>
    %30 = arith.divf %29, %28 : vector<1x1xf32>
    %cst_14 = arith.constant 0.000000e+00 : f32
    %31 = vector.broadcast %cst_14 : f32 to vector<1x1xf32>
    %32 = arith.subf %31, %24 : vector<1x1xf32>
    %33 = arith.mulf %32, %24 : vector<1x1xf32>
    %cst_15 = arith.constant 1.26551223 : f32
    %34 = vector.broadcast %cst_15 : f32 to vector<1x1xf32>
    %35 = arith.subf %33, %34 : vector<1x1xf32>
    %cst_16 = arith.constant 0.170872763 : f32
    %36 = vector.broadcast %cst_16 : f32 to vector<1x1xf32>
    %37 = arith.mulf %30, %36 : vector<1x1xf32>
    %cst_17 = arith.constant -0.822152256 : f32
    %38 = vector.broadcast %cst_17 : f32 to vector<1x1xf32>
    %39 = arith.addf %38, %37 : vector<1x1xf32>
    %40 = arith.mulf %30, %39 : vector<1x1xf32>
    %cst_18 = arith.constant 1.48851585 : f32
    %41 = vector.broadcast %cst_18 : f32 to vector<1x1xf32>
    %42 = arith.addf %41, %40 : vector<1x1xf32>
    %43 = arith.mulf %30, %42 : vector<1x1xf32>
    %cst_19 = arith.constant -1.13520396 : f32
    %44 = vector.broadcast %cst_19 : f32 to vector<1x1xf32>
    %45 = arith.addf %44, %43 : vector<1x1xf32>
    %46 = arith.mulf %30, %45 : vector<1x1xf32>
    %cst_20 = arith.constant 0.278868079 : f32
    %47 = vector.broadcast %cst_20 : f32 to vector<1x1xf32>
    %48 = arith.addf %47, %46 : vector<1x1xf32>
    %49 = arith.mulf %30, %48 : vector<1x1xf32>
    %cst_21 = arith.constant -0.186288059 : f32
    %50 = vector.broadcast %cst_21 : f32 to vector<1x1xf32>
    %51 = arith.addf %50, %49 : vector<1x1xf32>
    %52 = arith.mulf %30, %51 : vector<1x1xf32>
    %cst_22 = arith.constant 0.0967841818 : f32
    %53 = vector.broadcast %cst_22 : f32 to vector<1x1xf32>
    %54 = arith.addf %53, %52 : vector<1x1xf32>
    %55 = arith.mulf %30, %54 : vector<1x1xf32>
    %cst_23 = arith.constant 0.374091953 : f32
    %56 = vector.broadcast %cst_23 : f32 to vector<1x1xf32>
    %57 = arith.addf %56, %55 : vector<1x1xf32>
    %58 = arith.mulf %30, %57 : vector<1x1xf32>
    %cst_24 = arith.constant 1.00002372 : f32
    %59 = vector.broadcast %cst_24 : f32 to vector<1x1xf32>
    %60 = arith.addf %59, %58 : vector<1x1xf32>
    %61 = arith.mulf %30, %60 : vector<1x1xf32>
    %62 = arith.addf %35, %61 : vector<1x1xf32>
    %63 = math.exp %62 : vector<1x1xf32>
    %64 = arith.mulf %30, %63 : vector<1x1xf32>
    %cst_25 = arith.constant 0.000000e+00 : f32
    %65 = vector.broadcast %cst_25 : f32 to vector<1x1xf32>
    %66 = arith.cmpf oge, %23, %65 : vector<1x1xf32>
    %cst_26 = arith.constant 2.000000e+00 : f32
    %67 = vector.broadcast %cst_26 : f32 to vector<1x1xf32>
    %68 = arith.subf %67, %64 : vector<1x1xf32>
    %69 = arith.select %66, %64, %68 : vector<1x1xi1>, vector<1x1xf32>
    %cst_27 = arith.constant 1.000000e+00 : f32
    %70 = vector.broadcast %cst_27 : f32 to vector<1x1xf32>
    %71 = arith.subf %70, %69 : vector<1x1xf32>
    %cst_28 = arith.constant 1.000000e+00 : f32
    %72 = vector.broadcast %cst_28 : f32 to vector<1x1xf32>
    %73 = arith.addf %72, %71 : vector<1x1xf32>
    %74 = arith.mulf %21, %73 : vector<1x1xf32>
    %75 = vector.shape_cast %74 : vector<1x1xf32> to vector<1x1x1xf32>
    %c0_29 = arith.constant 0 : index
    %c0_30 = arith.constant 0 : index
    %76 = vector.load %arg4[%c0_29, %c0_30] : memref<1x128xf32, #tpu.memory_space<vmem>>, vector<1x128xf32>
    %77 = vector.shape_cast %76 : vector<1x128xf32> to vector<1x1x128xf32>
    %78 = vector.broadcast %75 : vector<1x1x1xf32> to vector<1x1x128xf32>
    %79 = arith.mulf %78, %77 : vector<1x1x128xf32>
    %cst_31 = arith.constant dense<0.000000e+00> : vector<1x128xf32>
    %80 = vector.multi_reduction <add>, %79, %cst_31 [1] : vector<1x1x128xf32> to vector<1x128xf32>
    %c0_32 = arith.constant 0 : index
    %c0_33 = arith.constant 0 : index
    %81 = vector.load %arg5[%c0_32, %c0_33] : memref<1x128xf32, #tpu.memory_space<vmem>>, vector<1x128xf32>
    %82 = arith.addf %80, %81 : vector<1x128xf32>
    %83 = arith.negf %82 : vector<1x128xf32>
    %84 = math.exp %83 : vector<1x128xf32>
    %cst_34 = arith.constant 1.000000e+00 : f32
    %85 = vector.broadcast %cst_34 : f32 to vector<1x128xf32>
    %86 = arith.addf %85, %84 : vector<1x128xf32>
    %87 = arith.divf %85, %86 : vector<1x128xf32>
    %88 = vector.shape_cast %87 : vector<1x128xf32> to vector<1x1x128xf32>
    %89 = vector.broadcast %88 : vector<1x1x128xf32> to vector<1x16x128xf32>
    %90 = arith.mulf %15, %89 : vector<1x16x128xf32>
    %91 = vector.extract_strided_slice %7 {offsets = [0, 0, 256], sizes = [1, 16, 128], strides = [1, 1, 1]} : vector<1x16x385xf32> to vector<1x16x128xf32>
    %92 = arith.addf %91, %90 : vector<1x16x128xf32>
    %93 = vector.extract_strided_slice %92 {offsets = [0, 0, 0], sizes = [1, 16, 48], strides = [1, 1, 1]} : vector<1x16x128xf32> to vector<1x16x48xf32>
    %c0_35 = arith.constant 0 : index
    %c0_36 = arith.constant 0 : index
    %c0_37 = arith.constant 0 : index
    %94 = vector.load %arg6[%c0_35, %c0_36, %c0_37] : memref<1x16x48xf32, #tpu.memory_space<vmem>>, vector<1x16x48xf32>
    tpu.vector_store %arg6[%c0_35, %c0_36, %c0_37], %93 {strides = array<i32>} : memref<1x16x48xf32, #tpu.memory_space<vmem>>, vector<1x16x48xf32>,
    return
  }
  func.func @transform_0(%arg0: i32) -> (i32, i32, i32) {
    %c0_i32 = arith.constant 0 : i32
    %c0_i32_0 = arith.constant 0 : i32
    %c0_i32_1 = arith.constant 0 : i32
    return %arg0, %c0_i32, %c0_i32_0 : i32, i32, i32
  }
  func.func @transform_1(%arg0: i32) -> (i32, i32) {
    %c0_i32 = arith.constant 0 : i32
    %c0_i32_0 = arith.constant 0 : i32
    %c0_i32_1 = arith.constant 0 : i32
    return %c0_i32, %c0_i32_0 : i32, i32
  }
  func.func @transform_2(%arg0: i32) -> (i32, i32) {
    %c0_i32 = arith.constant 0 : i32
    %c0_i32_0 = arith.constant 0 : i32
    %c0_i32_1 = arith.constant 0 : i32
    return %c0_i32, %c0_i32_0 : i32, i32
  }
  func.func @transform_3(%arg0: i32) -> (i32, i32) {
    %c0_i32 = arith.constant 0 : i32
    %c0_i32_0 = arith.constant 0 : i32
    %c0_i32_1 = arith.constant 0 : i32
    return %c0_i32, %c0_i32_0 : i32, i32
  }
  func.func @transform_4(%arg0: i32) -> (i32, i32) {
    %c0_i32 = arith.constant 0 : i32
    %c0_i32_0 = arith.constant 0 : i32
    %c0_i32_1 = arith.constant 0 : i32
    return %c0_i32, %c0_i32_0 : i32, i32
  }
  func.func @transform_5(%arg0: i32) -> (i32, i32, i32) {
    %c0_i32 = arith.constant 0 : i32
    %c0_i32_0 = arith.constant 0 : i32
    %c0_i32_1 = arith.constant 0 : i32
    return %arg0, %c0_i32, %c0_i32_0 : i32, i32, i32
  }
}

</mosaic_0001>

<llo_original>
// kernel: tpu_custom_call.1
$region0: #{tpu_custom_call.1}
  #allocation0 [shape = 'u32[]', space=smem, size = 0x4, offset = 0x4, fixed_abs, tag = 'smem constant byte address 0x4 - core index']
  #allocation1 [shape = 'u32[144,128]{1,0:T(1,128)}', space=vmem, size = 0x12000, scoped, tag = 'internal scratch']
  %s0 = inlined_call_operand.hbm [shape: f32[2,16,32], index: 0, kind: input, shape index: {}]
  %s1 = inlined_call_operand.hbm [shape: f32[32,385], index: 1, kind: input, shape index: {}]
  %s2 = inlined_call_operand.vmem [shape: f32[1,385], index: 2, kind: input, shape index: {}]
  %s3 = inlined_call_operand.vmem [shape: f32[1,128], index: 3, kind: input, shape index: {}]
  %s4 = inlined_call_operand.vmem [shape: f32[1,128], index: 4, kind: input, shape index: {}]
  %s5 = inlined_call_operand.hbm [shape: f32[2,16,48], index: 5, kind: output, shape index: {}]
  %s6 = sld [smem:[#allocation0]]
  $region61: #{tpu_custom_call.1} parent=0
    _
  %s8 = ssub.s32 1, %s6
  %s9 = scalar_select 0, %s8, %s6
  $region1: #{tpu_custom_call.1} parent=0
    #allocation2 [shape = 'u8[16384]{0}', space=vmem, size = 0x4000, scoped, tag = 'input window, operand 0']
    #allocation3 [shape = 's32[2]{0}', space=sflag, size = 0x8, scoped, tag = 'scoped memory for tpu_custom_call.1']
    #allocation4 [shape = 's32[2]{0}', space=sflag, size = 0x8, scoped, tag = 'scoped memory for tpu_custom_call.1']
    #allocation5 [shape = 'u8[65536]{0}', space=vmem, size = 0x10000, scoped, tag = 'input window, operand 1, single buffered']
    #allocation6 [shape = 's32[1]{0}', space=sflag, size = 0x4, scoped, tag = 'scoped memory for tpu_custom_call.1']
    #allocation7 [shape = 'u8[16384]{0}', space=vmem, size = 0x4000, scoped, tag = 'output window, operand 0']
    %10 = vsyncpa [#allocation3], 0
    %s11 = scalar_lea.sflag [#allocation3], 1
    %12 = vsyncpa %s11, 0
    %13 = vsyncpa [#allocation6], 0
    %14 = vsyncpa [#allocation4], 0
    %s15 = scalar_lea.sflag [#allocation4], 1
    %16 = vsyncpa %s15, 0
    loop: start=0, step=1, limit=4
    $region2: #{tpu_custom_call.1} parent=1 // loop_pre_header
      _
    $region3: #{tpu_custom_call.1} parent=1 // loop_header
      %s18 = sphi 0, %s22
      %p19 = scmp.ge.s32.totalorder %s18, 4
      %s28 = sphi 0, %s30
      %s31 = sphi 0, %s28
      %s32 = sphi 0, %s31
      %s48 = sphi 0, %s32
      %s52 = sphi 0, %s52
      %s54 = sphi 0, %s52
      %s55 = sphi 0, %s54
      %s69 = sphi 0, %s55
      %s73 = sphi 0, %s73
      %s75 = sphi 0, %s73
      %s76 = sphi 0, %s75
      %s90 = sphi 0, %s76
      %s94 = sphi 0, %s94
      %s96 = sphi 0, %s94
      %s97 = sphi 0, %s96
      %s111 = sphi 0, %s97
      %s115 = sphi 0, %s115
      %s117 = sphi 0, %s115
      %s118 = sphi 0, %s117
      %s132 = sphi 0, %s118
      %s138 = sphi 0, %s140
      %s141 = sphi 0, %s138
      %s142 = sphi 0, %s141
      %s158 = sphi 0, %s142
    $region4: #{tpu_custom_call.1} parent=1 // loop_header_branch
      %21 = sbr.rel (%p19) target = $region8
    $region5: #{tpu_custom_call.1} parent=1 // loop_body
      %s23 = ssub.s32 %s18, 1
      %s24 = ssub.s32 %s18, 2
      %s25 = sadd.s32 %s18, 1
      %s26 = ssub.s32 %s18, %s25
      %p27 = scmp.eq.s32.totalorder %s26, 0
      %s29 = sadd.s32 %s28, 1
      %s30 = scalar_select %p27, %s28, %s29
      %p33 = pneg %p27
      %p34 = scmp.eq.s32.totalorder %s18, 1
      %p35 = por %p33, %p34
      %p36 = scmp.ne.s32.totalorder %s28, %s31
      %p37 = scmp.eq.s32.totalorder %s18, 0
      %p38 = por %p36, %p37
      %p39 = scmp.ne.s32.totalorder %s28, %s31
      %p40 = scmp.eq.s32.totalorder %s23, 1
      %p41 = por %p39, %p40
      %p42 = scmp.ne.s32.totalorder %s31, %s32
      %p43 = scmp.eq.s32.totalorder %s23, 0
      %p44 = por %p42, %p43
      %p45 = scmp.ne.s32.totalorder %s31, %s32
      %p46 = scmp.eq.s32.totalorder %s24, 1
      %p47 = por %p45, %p46
      %p49 = scmp.ne.s32.totalorder %s32, %s48
      %p50 = scmp.eq.s32.totalorder %s24, 0
      %p51 = por %p49, %p50
      %s53 = sadd.s32 %s52, 1
      %p56 = scmp.eq.s32.totalorder %s18, 1
      %p57 = scmp.ne.s32.totalorder %s52, %s54
      %p58 = scmp.eq.s32.totalorder %s18, 0
      %p59 = por %p57, %p58
      %p60 = scmp.ne.s32.totalorder %s52, %s54
      %p61 = scmp.eq.s32.totalorder %s23, 1
      %p62 = por %p60, %p61
      %p63 = scmp.ne.s32.totalorder %s54, %s55
      %p64 = scmp.eq.s32.totalorder %s23, 0
      %p65 = por %p63, %p64
      %p66 = scmp.ne.s32.totalorder %s54, %s55
      %p67 = scmp.eq.s32.totalorder %s24, 1
      %p68 = por %p66, %p67
      %p70 = scmp.ne.s32.totalorder %s55, %s69
      %p71 = scmp.eq.s32.totalorder %s24, 0
      %p72 = por %p70, %p71
      %s74 = sadd.s32 %s73, 1
      %p77 = scmp.eq.s32.totalorder %s18, 1
      %p78 = scmp.ne.s32.totalorder %s73, %s75
      %p79 = scmp.eq.s32.totalorder %s18, 0
      %p80 = por %p78, %p79
      %p81 = scmp.ne.s32.totalorder %s73, %s75
      %p82 = scmp.eq.s32.totalorder %s23, 1
      %p83 = por %p81, %p82
      %p84 = scmp.ne.s32.totalorder %s75, %s76
      %p85 = scmp.eq.s32.totalorder %s23, 0
      %p86 = por %p84, %p85
      %p87 = scmp.ne.s32.totalorder %s75, %s76
      %p88 = scmp.eq.s32.totalorder %s24, 1
      %p89 = por %p87, %p88
      %p91 = scmp.ne.s32.totalorder %s76, %s90
      %p92 = scmp.eq.s32.totalorder %s24, 0
      %p93 = por %p91, %p92
      %s95 = sadd.s32 %s94, 1
      %p98 = scmp.eq.s32.totalorder %s18, 1
      %p99 = scmp.ne.s32.totalorder %s94, %s96
      %p100 = scmp.eq.s32.totalorder %s18, 0
      %p101 = por %p99, %p100
      %p102 = scmp.ne.s32.totalorder %s94, %s96
      %p103 = scmp.eq.s32.totalorder %s23, 1
      %p104 = por %p102, %p103
      %p105 = scmp.ne.s32.totalorder %s96, %s97
      %p106 = scmp.eq.s32.totalorder %s23, 0
      %p107 = por %p105, %p106
      %p108 = scmp.ne.s32.totalorder %s96, %s97
      %p109 = scmp.eq.s32.totalorder %s24, 1
      %p110 = por %p108, %p109
      %p112 = scmp.ne.s32.totalorder %s97, %s111
      %p113 = scmp.eq.s32.totalorder %s24, 0
      %p114 = por %p112, %p113
      %s116 = sadd.s32 %s115, 1
      %p119 = scmp.eq.s32.totalorder %s18, 1
      %p120 = scmp.ne.s32.totalorder %s115, %s117
      %p121 = scmp.eq.s32.totalorder %s18, 0
      %p122 = por %p120, %p121
      %p123 = scmp.ne.s32.totalorder %s115, %s117
      %p124 = scmp.eq.s32.totalorder %s23, 1
      %p125 = por %p123, %p124
      %p126 = scmp.ne.s32.totalorder %s117, %s118
      %p127 = scmp.eq.s32.totalorder %s23, 0
      %p128 = por %p126, %p127
      %p129 = scmp.ne.s32.totalorder %s117, %s118
      %p130 = scmp.eq.s32.totalorder %s24, 1
      %p131 = por %p129, %p130
      %p133 = scmp.ne.s32.totalorder %s118, %s132
      %p134 = scmp.eq.s32.totalorder %s24, 0
      %p135 = por %p133, %p134
      %s136 = ssub.s32 %s18, %s25
      %p137 = scmp.eq.s32.totalorder %s136, 0
      %s139 = sadd.s32 %s138, 1
      %s140 = scalar_select %p137, %s138, %s139
      %p143 = pneg %p137
      %p144 = scmp.eq.s32.totalorder %s18, 1
      %p145 = por %p143, %p144
      %p146 = scmp.ne.s32.totalorder %s138, %s141
      %p147 = scmp.eq.s32.totalorder %s18, 0
      %p148 = por %p146, %p147
      %p149 = scmp.ne.s32.totalorder %s138, %s141
      %p150 = scmp.eq.s32.totalorder %s23, 1
      %p151 = por %p149, %p150
      %p152 = scmp.ne.s32.totalorder %s141, %s142
      %p153 = scmp.eq.s32.totalorder %s23, 0
      %p154 = por %p152, %p153
      %p155 = scmp.ne.s32.totalorder %s141, %s142
      %p156 = scmp.eq.s32.totalorder %s24, 1
      %p157 = por %p155, %p156
      %p159 = scmp.ne.s32.totalorder %s142, %s158
      %p160 = scmp.eq.s32.totalorder %s24, 0
      %p161 = por %p159, %p160
      %p162 = scmp.le.s32.totalorder 1, %s18
      %p163 = scmp.lt.s32.totalorder %s18, 3
      %p164 = pnand %p162, %p163
      %p165 = pneg %p164
      // Predicated region
      $region9: #{tpu_custom_call.1} parent=5 // pred_check
        _
      $region10: #{tpu_custom_call.1} parent=5 // pred_check_branch
        %167 = sbr.rel (%p164) target = $region12
      $region11: #{tpu_custom_call.1} parent=5 // pred_region
        %s168 = ssub.s32 %s18, 1
        // Predicated region
        $region13: #{tpu_custom_call.1} parent=11 // pred_check
          %p169 = pneg %p65
        $region14: #{tpu_custom_call.1} parent=11 // pred_check_branch
          %171 = sbr.rel (%p169) target = $region16
        $region15: #{tpu_custom_call.1} parent=11 // pred_region
          %s173 = ssub.s32 2048, 2048
          %174 = vsyncadd [#allocation6], %s173
          %s175 = sshll.u32 [#allocation5], 4
          %s176 = int_to_ptr.vmem [resolvable:$true] %s175
          %181 = dma.hbm_to_vmem [thread:$0]  %s1, 2048, %s176, [#allocation6], 512, 512, 32
        $region16: #{tpu_custom_call.1} parent=11 // pred_fallthru
          _
        // Predicated region
        $region17: #{tpu_custom_call.1} parent=11 // pred_check
          %p182 = pneg %p86
        $region18: #{tpu_custom_call.1} parent=11 // pred_check_branch
          %184 = sbr.rel (%p182) target = $region20
        $region19: #{tpu_custom_call.1} parent=11 // pred_region
          _
        $region20: #{tpu_custom_call.1} parent=11 // pred_fallthru
          _
        // Predicated region
        $region21: #{tpu_custom_call.1} parent=11 // pred_check
          %p185 = pneg %p107
        $region22: #{tpu_custom_call.1} parent=11 // pred_check_branch
          %187 = sbr.rel (%p185) target = $region24
        $region23: #{tpu_custom_call.1} parent=11 // pred_region
          _
        $region24: #{tpu_custom_call.1} parent=11 // pred_fallthru
          _
        // Predicated region
        $region25: #{tpu_custom_call.1} parent=11 // pred_check
          %p188 = pneg %p128
        $region26: #{tpu_custom_call.1} parent=11 // pred_check_branch
          %190 = sbr.rel (%p188) target = $region28
        $region27: #{tpu_custom_call.1} parent=11 // pred_region
          _
        $region28: #{tpu_custom_call.1} parent=11 // pred_fallthru
          _
      $region12: #{tpu_custom_call.1} parent=5 // pred_fallthru
        _
      %p191 = scmp.lt.s32.totalorder %s18, 2
      // Predicated region
      $region29: #{tpu_custom_call.1} parent=5 // pred_check
        %p192 = pneg %p191
      $region30: #{tpu_custom_call.1} parent=5 // pred_check_branch
        %194 = sbr.rel (%p192) target = $region32
      $region31: #{tpu_custom_call.1} parent=5 // pred_region
        // Predicated region
        $region33: #{tpu_custom_call.1} parent=31 // pred_check
          %p195 = pneg %p38
        $region34: #{tpu_custom_call.1} parent=31 // pred_check_branch
          %197 = sbr.rel (%p195) target = $region36
        $region35: #{tpu_custom_call.1} parent=31 // pred_region
          %s198 = sand.u32 %s28, 1
          %s199 = scalar_lea.sflag [#allocation3], %s198
          %s200 = sand.u32 %s28, 1
          %s201 = smul.addr %s200, 16
          %s202 = scalar_lea.vmem [#allocation2], %s201
          %s204 = ssub.s32 256, 256
          %205 = vsyncadd %s199, %s204
          %s206 = smul.addr %s18, 2
          %s207 = smul.addr %s206, 128
          %s208 = scalar_lea.hbm %s0, %s207
          %s209 = sshll.u32 %s202, 4
          %s210 = int_to_ptr.vmem [resolvable:$true] %s209
          %215 = dma.hbm_to_vmem [thread:$0]  %s208, 256, %s210, %s199, 128, 128, 8
        $region36: #{tpu_custom_call.1} parent=31 // pred_fallthru
          _
      $region32: #{tpu_custom_call.1} parent=5 // pred_fallthru
        _
      %p216 = scmp.le.s32.totalorder 1, %s18
      %p217 = scmp.lt.s32.totalorder %s18, 3
      %p218 = pnand %p216, %p217
      %p219 = pneg %p218
      // Predicated region
      $region37: #{tpu_custom_call.1} parent=5 // pred_check
        _
      $region38: #{tpu_custom_call.1} parent=5 // pred_check_branch
        %221 = sbr.rel (%p218) target = $region40
      $region39: #{tpu_custom_call.1} parent=5 // pred_region
        %s222 = ssub.s32 %s18, 1
        %s223 = sand.u32 %s31, 1
        %s224 = scalar_lea.sflag [#allocation3], %s223
        %s225 = sand.u32 %s31, 1
        %s226 = smul.addr %s225, 16
        %s227 = scalar_lea.vmem [#allocation2], %s226
        // Predicated region
        $region41: #{tpu_custom_call.1} parent=39 // pred_check
          %p228 = pneg %p44
        $region42: #{tpu_custom_call.1} parent=39 // pred_check_branch
          %230 = sbr.rel (%p228) target = $region44
        $region43: #{tpu_custom_call.1} parent=39 // pred_region
          %231 = dma.done %s224, 256
        $region44: #{tpu_custom_call.1} parent=39 // pred_fallthru
          _
        // Predicated region
        $region45: #{tpu_custom_call.1} parent=39 // pred_check
          %p232 = pneg %p65
        $region46: #{tpu_custom_call.1} parent=39 // pred_check_branch
          %234 = sbr.rel (%p232) target = $region48
        $region47: #{tpu_custom_call.1} parent=39 // pred_region
          %235 = dma.done [#allocation6], 2048
        $region48: #{tpu_custom_call.1} parent=39 // pred_fallthru
          _
        %s236 = sand.u32 %s31, 1
        %s237 = scalar_lea.sflag [#allocation3], %s236
        %s238 = sand.u32 %s31, 1
        %s239 = smul.addr %s238, 16
        %s240 = scalar_lea.vmem [#allocation2], %s239
        %p241 = pneg %p44
        %p242 = pneg %p41
        %p243 = pneg %p65
        %p244 = pneg %p62
        %p245 = pneg %p86
        %p246 = pneg %p83
        %p247 = pneg %p107
        %p248 = pneg %p104
        %p249 = pneg %p128
        %p250 = pneg %p125
        %p251 = pneg %p154
        %p252 = pneg %p151
        %s253 = sand.u32 %s141, 1
        %s254 = scalar_lea.sflag [#allocation4], %s253
        %s255 = sand.u32 %s141, 1
        %s256 = smul.addr %s255, 16
        %s257 = scalar_lea.vmem [#allocation7], %s256
        %v258 = vld [vmem:[%s227] sm:$0xff]
        %v259 = vld [vmem:[%s227 + $0x8] sm:$0xff]
        %v260 = vld [vmem:[#allocation5] sm:$0xff]
        %v261 = vld [vmem:[#allocation5 + $0x8] sm:$0xff]
        %v262 = vld [vmem:[#allocation5 + $0x10] sm:$0xff]
        %v263 = vld [vmem:[#allocation5 + $0x18] sm:$0xff]
        %v264 = vld [vmem:[#allocation5 + $0x20] sm:$0xff]
        %v265 = vld [vmem:[#allocation5 + $0x28] sm:$0xff]
        %v266 = vld [vmem:[#allocation5 + $0x30] sm:$0xff]
        %v267 = vld [vmem:[#allocation5 + $0x38] sm:$0xff]
        %v268 = vld [vmem:[#allocation5 + $0x40] sm:$0xff]
        %v269 = vld [vmem:[#allocation5 + $0x48] sm:$0xff]
        %v270 = vld [vmem:[#allocation5 + $0x50] sm:$0xff]
        %v271 = vld [vmem:[#allocation5 + $0x58] sm:$0xff]
        %v272 = vld [vmem:[#allocation5 + $0x60] sm:$0xff]
        %v273 = vld [vmem:[#allocation5 + $0x68] sm:$0xff]
        %v274 = vld [vmem:[#allocation5 + $0x70] sm:$0xff]
        %v275 = vld [vmem:[#allocation5 + $0x78] sm:$0xff]
        %v276 = vld [vmem:[%s2] sm:$0xf]
        %v278 = vlaneseq
        %v279 = vshrl.u32 %v278, 7
        %v280 = vsub.s32 0, %v279
        %v281 = vrot.slane %v276, %v280
        %v282 = vlaneseq
        %v283 = vshrl.u32 %v282, 7
        %v284 = vsub.s32 1, %v283
        %v285 = vrot.slane %v276, %v284
        %v286 = vlaneseq
        %v287 = vshrl.u32 %v286, 7
        %v288 = vsub.s32 2, %v287
        %v289 = vrot.slane %v276, %v288
        %v290 = vlaneseq
        %v291 = vshrl.u32 %v290, 7
        %v292 = vsub.s32 3, %v291
        %v293 = vrot.slane %v276, %v292
        %vm298 = vcmask 261120
        %v300 = vsel %vm298, %v258, 0
        %v303 = vsel %vm298, %v259, 0
        %305 = vmatprep.subr.mxu0 %v261
        %306 = vmatpush1.msra.mxu0 %v260
        %307 = vmatprep.subr.mxu0 %v265
        %308 = vmatpush1.msra.mxu0 %v264
        %309 = vmatprep.subr.mxu0 %v269
        %310 = vmatpush1.msra.mxu0 %v268
        %311 = vmatprep.subr.mxu0 %v273
        %312 = vmatpush1.msra.mxu0 %v272
        %313 = vmatprep.subr.mxu0 0.0
        %314 = vmatpush1.msra.mxu0 0.0
        %315 = vmatprep.subr.mxu0 0.0
        %316 = vmatpush1.msra.mxu0 0.0
        %317 = vmatprep.subr.mxu0 0.0
        %318 = vmatpush1.msra.mxu0 0.0
        %319 = vmatprep.subr.mxu0 0.0
        %320 = vmatpush1.msra.mxu0 0.0
        %321 = vmatprep.subr.mxu0 0.0
        %322 = vmatpush1.msra.mxu0 0.0
        %323 = vmatprep.subr.mxu0 0.0
        %324 = vmatpush1.msra.mxu0 0.0
        %325 = vmatprep.subr.mxu0 0.0
        %326 = vmatpush1.msra.mxu0 0.0
        %327 = vmatprep.subr.mxu0 0.0
        %328 = vmatpush1.msra.mxu0 0.0
        %329 = vmatprep.subr.mxu0 0.0
        %330 = vmatpush1.msra.mxu0 0.0
        %331 = vmatprep.subr.mxu0 0.0
        %332 = vmatpush1.msra.mxu0 0.0
        %333 = vmatprep.subr.mxu0 0.0
        %334 = vmatpush1.msra.mxu0 0.0
        %335 = vmatprep.subr.mxu0 0.0
        %336 = vmatpush1.msra.mxu0 0.0
        %337 = vmatprep.subr.mxu0 0.0
        %338 = vmatpush1.msra.mxu0 0.0
        %339 = vmatprep.subr.mxu0 0.0
        %340 = vmatpush1.msra.mxu0 0.0
        %341 = vmatprep.subr.mxu0 0.0
        %342 = vmatpush1.msra.mxu0 0.0
        %343 = vmatprep.subr.mxu0 0.0
        %344 = vmatpush1.msra.mxu0 0.0
        %345 = vmatprep.subr.mxu0 0.0
        %346 = vmatpush1.msra.mxu0 0.0
        %347 = vmatprep.subr.mxu0 0.0
        %348 = vmatpush1.msra.mxu0 0.0
        %349 = vmatprep.subr.mxu0 0.0
        %350 = vmatpush1.msra.mxu0 0.0
        %351 = vmatprep.subr.mxu0 0.0
        %352 = vmatpush1.msra.mxu0 0.0
        %353 = vmatprep.subr.mxu0 0.0
        %354 = vmatpush1.msra.mxu0 0.0
        %355 = vmatprep.subr.mxu0 0.0
        %356 = vmatpush1.msra.mxu0 0.0
        %357 = vmatprep.subr.mxu0 0.0
        %358 = vmatpush1.msra.mxu0 0.0
        %359 = vmatprep.subr.mxu0 0.0
        %360 = vmatpush1.msra.mxu0 0.0
        %361 = vmatprep.subr.mxu0 0.0
        %362 = vmatpush1.msra.mxu0 0.0
        %363 = vmatprep.subr.mxu0 0.0
        %364 = vmatpush1.msra.mxu0 0.0
        %365 = vmatprep.subr.mxu0 0.0
        %366 = vmatpush1.msra.mxu0 0.0
        %367 = vmatprep.subr.mxu0 0.0
        %368 = vmatpush1.msra.mxu0 0.0
        %369 = vmatprep.mubr.f32.mxu0 0.0
        %370 = vmatmul.mubr.f32.gmra.mrb[0].mxu0 %v300
        %v371 = vpop.f32.mrb[0].mxu0
        %v372 = vadd.f32 %v281, %v371
        %v373 = vpop.f32.mrb[0].mxu0
        %v374 = vadd.f32 %v285, %v373
        %375 = vmatprep.mubr.f32.mxu0 0.0
        %376 = vmatmul.mubr.f32.gmra.mrb[0].mxu0 %v303
        %v377 = vpop.f32.mrb[0].mxu0
        %v378 = vadd.f32 %v281, %v377
        %v379 = vpop.f32.mrb[0].mxu0
        %v380 = vadd.f32 %v285, %v379
        %381 = vdwg.mxu0
        %382 = vmatprep.subr.mxu0 %v263
        %383 = vmatpush1.msra.mxu0 %v262
        %384 = vmatprep.subr.mxu0 %v267
        %385 = vmatpush1.msra.mxu0 %v266
        %386 = vmatprep.subr.mxu0 %v271
        %387 = vmatpush1.msra.mxu0 %v270
        %388 = vmatprep.subr.mxu0 %v275
        %389 = vmatpush1.msra.mxu0 %v274
        %390 = vmatprep.subr.mxu0 0.0
        %391 = vmatpush1.msra.mxu0 0.0
        %392 = vmatprep.subr.mxu0 0.0
        %393 = vmatpush1.msra.mxu0 0.0
        %394 = vmatprep.subr.mxu0 0.0
        %395 = vmatpush1.msra.mxu0 0.0
        %396 = vmatprep.subr.mxu0 0.0
        %397 = vmatpush1.msra.mxu0 0.0
        %398 = vmatprep.subr.mxu0 0.0
        %399 = vmatpush1.msra.mxu0 0.0
        %400 = vmatprep.subr.mxu0 0.0
        %401 = vmatpush1.msra.mxu0 0.0
        %402 = vmatprep.subr.mxu0 0.0
        %403 = vmatpush1.msra.mxu0 0.0
        %404 = vmatprep.subr.mxu0 0.0
        %405 = vmatpush1.msra.mxu0 0.0
        %406 = vmatprep.subr.mxu0 0.0
        %407 = vmatpush1.msra.mxu0 0.0
        %408 = vmatprep.subr.mxu0 0.0
        %409 = vmatpush1.msra.mxu0 0.0
        %410 = vmatprep.subr.mxu0 0.0
        %411 = vmatpush1.msra.mxu0 0.0
        %412 = vmatprep.subr.mxu0 0.0
        %413 = vmatpush1.msra.mxu0 0.0
        %414 = vmatprep.subr.mxu0 0.0
        %415 = vmatpush1.msra.mxu0 0.0
        %416 = vmatprep.subr.mxu0 0.0
        %417 = vmatpush1.msra.mxu0 0.0
        %418 = vmatprep.subr.mxu0 0.0
        %419 = vmatpush1.msra.mxu0 0.0
        %420 = vmatprep.subr.mxu0 0.0
        %421 = vmatpush1.msra.mxu0 0.0
        %422 = vmatprep.subr.mxu0 0.0
        %423 = vmatpush1.msra.mxu0 0.0
        %424 = vmatprep.subr.mxu0 0.0
        %425 = vmatpush1.msra.mxu0 0.0
        %426 = vmatprep.subr.mxu0 0.0
        %427 = vmatpush1.msra.mxu0 0.0
        %428 = vmatprep.subr.mxu0 0.0
        %429 = vmatpush1.msra.mxu0 0.0
        %430 = vmatprep.subr.mxu0 0.0
        %431 = vmatpush1.msra.mxu0 0.0
        %432 = vmatprep.subr.mxu0 0.0
        %433 = vmatpush1.msra.mxu0 0.0
        %434 = vmatprep.subr.mxu0 0.0
        %435 = vmatpush1.msra.mxu0 0.0
        %436 = vmatprep.subr.mxu0 0.0
        %437 = vmatpush1.msra.mxu0 0.0
        %438 = vmatprep.subr.mxu0 0.0
        %439 = vmatpush1.msra.mxu0 0.0
        %440 = vmatprep.subr.mxu0 0.0
        %441 = vmatpush1.msra.mxu0 0.0
        %442 = vmatprep.subr.mxu0 0.0
        %443 = vmatpush1.msra.mxu0 0.0
        %444 = vmatprep.subr.mxu0 0.0
        %445 = vmatpush1.msra.mxu0 0.0
        %446 = vmatprep.mubr.f32.mxu0 0.0
        %447 = vmatmul.mubr.f32.gmra.mrb[0].mxu0 %v300
        %v448 = vpop.f32.mrb[0].mxu0
        %v449 = vadd.f32 %v289, %v448
        %v450 = vpop.f32.mrb[0].mxu0
        %v451 = vadd.f32 %v293, %v450
        %452 = vmatprep.mubr.f32.mxu0 0.0
        %453 = vmatmul.mubr.f32.gmra.mrb[0].mxu0 %v303
        %v454 = vpop.f32.mrb[0].mxu0
        %v455 = vadd.f32 %v289, %v454
        %v456 = vpop.f32.mrb[0].mxu0
        %v457 = vadd.f32 %v293, %v456
        %458 = vdwg.mxu0
        %v459 = vxor.u32 %v374, 2147483648
        %v460 = vxor.u32 %v380, 2147483648
        %v461 = vmul.f32 %v459, 1.442695
        %v462 = vpow.pop %v461
        %v463 = vmul.f32 %v460, 1.442695
        %v464 = vpow.pop %v463
        %v465 = vadd.f32 %v462, 1.0
        %v466 = vadd.f32 %v464, 1.0
        %v467 = vrcp.pop %v465
        %v468 = vmul.f32 1.0, %v467
        %v469 = vrcp.pop %v466
        %v470 = vmul.f32 1.0, %v469
        %v471 = vmul.f32 %v372, %v468
        %v472 = vmul.f32 %v378, %v470
        %vm473 = vcmask 7168
        %v474 = vsel %vm473, %v451, 0.0
        %v475 = vsel %vm473, %v457, 0.0
        %v476 = vadd.f32 %v474, %v475
        %v477 = vrot.slane %v476, 4
        %v478 = vadd.f32 %v476, %v477
        %v479 = vrot.slane %v478, 2
        %v480 = vadd.f32 %v478, %v479
        %v481 = vrot.slane %v480, 1
        %v482 = vadd.f32 %v480, %v481
        %v483 = vrcp.pop 16.0
        %v484 = vmul.f32 %v482, %v483
        %v485 = vmul.f32 %v484, 0.5
        %v486 = vmul.f32 %v484, 0.70710677
        %v487 = vand.u32 2147483647, %v486
        %v488 = vmul.f32 %v487, 0.5
        %v489 = vadd.f32 %v488, 1.0
        %v490 = vrcp.pop %v489
        %v491 = vmul.f32 1.0, %v490
        %v492 = vsub.f32 0.0, %v487
        %v493 = vmul.f32 %v492, %v487
        %v494 = vsub.f32 %v493, 1.2655122
        %v495 = vmul.f32 %v491, 0.17087276
        %v496 = vadd.f32 %v495, -0.82215226
        %v497 = vmul.f32 %v491, %v496
        %v498 = vadd.f32 %v497, 1.4885159
        %v499 = vmul.f32 %v491, %v498
        %v500 = vadd.f32 %v499, -1.135204
        %v501 = vmul.f32 %v491, %v500
        %v502 = vadd.f32 %v501, 0.27886808
        %v503 = vmul.f32 %v491, %v502
        %v504 = vadd.f32 %v503, -0.18628806
        %v505 = vmul.f32 %v491, %v504
        %v506 = vadd.f32 %v505, 0.09678418
        %v507 = vmul.f32 %v491, %v506
        %v508 = vadd.f32 %v507, 0.37409195
        %v509 = vmul.f32 %v491, %v508
        %v510 = vadd.f32 %v509, 1.0000237
        %v511 = vmul.f32 %v491, %v510
        %v512 = vadd.f32 %v494, %v511
        %v513 = vmul.f32 %v512, 1.442695
        %v514 = vpow.pop %v513
        %v515 = vmul.f32 %v491, %v514
        %vm516 = vcmp.ge.f32.partialorder %v486, 0.0
        %v517 = vsub.f32 2.0, %v515
        %v518 = vsel %vm516, %v515, %v517
        %v519 = vsub.f32 1.0, %v518
        %v520 = vadd.f32 %v519, 1.0
        %v521 = vmul.f32 %v485, %v520
        %v522 = vld [vmem:[%s3] sm:$0x1]
        %524 = vset.pattern.permute.xlu0 0
        %525 = vperm.xlu0 %524, %v521
        %v526 = vpop.permute.xlu0 %525
        %v528 = vmul.f32 %v526, %v522
        %v529 = vadd.f32 %v528, 0.0
        %v530 = vld [vmem:[%s4] sm:$0x1]
        %v531 = vadd.f32 %v529, %v530
        %v532 = vxor.u32 %v531, 2147483648
        %v533 = vmul.f32 %v532, 1.442695
        %v534 = vpow.pop %v533
        %v535 = vadd.f32 %v534, 1.0
        %v536 = vrcp.pop %v535
        %v537 = vmul.f32 1.0, %v536
        %v539 = vlaneseq
        %v540 = vshrl.u32 %v539, 7
        %v541 = vsub.s32 0, %v540
        %v542 = vrot.slane %v537, %v541
        %v544 = vmul.f32 %v471, %v542
        %v545 = vmul.f32 %v472, %v542
        %v546 = vadd.f32 %v449, %v544
        %v547 = vadd.f32 %v455, %v545
        %vm548 = vcmask 392192
        %549 = vst.msk [vmem:[%s257] sm:$0xff] %vm548, %v546
        %550 = vst.msk [vmem:[%s257 + $0x8] sm:$0xff] %vm548, %v547
        %s551 = sand.u32 %s141, 1
        %s552 = scalar_lea.sflag [#allocation4], %s551
        %s553 = sand.u32 %s141, 1
        %s554 = smul.addr %s553, 16
        %s555 = scalar_lea.vmem [#allocation7], %s554
        // Predicated region
        $region49: #{tpu_custom_call.1} parent=39 // pred_check
          %p556 = pneg %p151
        $region50: #{tpu_custom_call.1} parent=39 // pred_check_branch
          %558 = sbr.rel (%p556) target = $region52
        $region51: #{tpu_custom_call.1} parent=39 // pred_region
          %s560 = ssub.s32 256, 256
          %561 = vsyncadd %s552, %s560
          %s562 = smul.addr %s23, 2
          %s563 = smul.addr %s562, 128
          %s564 = scalar_lea.hbm %s5, %s563
          %s565 = sshll.u32 %s555, 4
          %s566 = int_to_ptr.vmem [resolvable:$true] %s565
          %571 = dma.vmem_to_hbm [thread:$0]  %s566, 256, %s564, %s552, 128, 128, 8
        $region52: #{tpu_custom_call.1} parent=39 // pred_fallthru
          _
      $region40: #{tpu_custom_call.1} parent=5 // pred_fallthru
        _
      %p572 = scmp.le.s32.totalorder 2, %s18
      // Predicated region
      $region53: #{tpu_custom_call.1} parent=5 // pred_check
        %p573 = pneg %p572
      $region54: #{tpu_custom_call.1} parent=5 // pred_check_branch
        %575 = sbr.rel (%p573) target = $region56
      $region55: #{tpu_custom_call.1} parent=5 // pred_region
        %s576 = ssub.s32 %s18, 2
        // Predicated region
        $region57: #{tpu_custom_call.1} parent=55 // pred_check
          %p577 = pneg %p157
        $region58: #{tpu_custom_call.1} parent=55 // pred_check_branch
          %579 = sbr.rel (%p577) target = $region60
        $region59: #{tpu_custom_call.1} parent=55 // pred_region
          %s580 = sand.u32 %s142, 1
          %s581 = scalar_lea.sflag [#allocation4], %s580
          %s582 = sand.u32 %s142, 1
          %s583 = smul.addr %s582, 16
          %s584 = scalar_lea.vmem [#allocation7], %s583
          %585 = dma.done %s581, 256
        $region60: #{tpu_custom_call.1} parent=55 // pred_fallthru
          _
      $region56: #{tpu_custom_call.1} parent=5 // pred_fallthru
        _
    $region6: #{tpu_custom_call.1} parent=1 // loop_footer
      %s22 = sadd.s32 1, %s18
    $region7: #{tpu_custom_call.1} parent=1 // loop_footer_branch
      %17 = sbr.rel target = $region3
    $region8: #{tpu_custom_call.1} parent=1 // loop_exit
      _
    %586 = vsyncpa [#allocation3], 1
    %s587 = scalar_lea.sflag [#allocation3], 1
    %588 = vsyncpa %s587, 1
    %589 = vsyncpa [#allocation6], 1
    %590 = vsyncpa [#allocation4], 1
    %s591 = scalar_lea.sflag [#allocation4], 1
    %592 = vsyncpa %s591, 1

</llo_original>
